<compile_context>
chip_gen: v7x
topology: tpu7x:2x2x1
jax: 0.10.0
libtpu: 0.0.40
codegen_flags: <defaults>
</compile_context>

<pallas_src>
import functools

import jax
import jax.numpy as jnp
import numpy as np
from jax import lax
from jax.experimental import pallas as pl
from jax.experimental.pallas import tpu as pltpu

BOHR = 0.5291772105638411  # ase.units.Bohr (Angstrom per Bohr radius)


def _pairwise_expansion_kernel(
    t_ref,      # (1, TM, 3)        target coords for this Nt tile
    s_ref,      # (1, 3, Ns)        source coords, component-major
    dist_ref,   # (1, TM, Ns)
    dir_ref,    # (1, 3, TM, Ns)
    mask_ref,   # (1, TM, Ns)
    exp_ref,    # (1, features, TM, Ns)
    *, cut_dist_bohr, features, self_send, epsilon, distance_mul,
):
    step = cut_dist_bohr / features
    inv_2s2 = 1.0 / (2.0 * step * step)

    t = t_ref[0]                      # (TM, 3)
    s = s_ref[0]                      # (3, Ns)

    # Per-component outer differences: (TM, 1) - (1, Ns) -> (TM, Ns).
    dx = t[:, 0:1] - s[0:1, :]
    dy = t[:, 1:2] - s[1:2, :]
    dz = t[:, 2:3] - s[2:3, :]

    d2 = dx * dx + dy * dy + dz * dz  # (TM, Ns)
    nonzero = d2 > 0.0

    dist = jnp.sqrt(d2)
    dist_ref[0] = dist

    # Unit directions via rsqrt (EUP) instead of a per-pair divide; safe at 0.
    inv = jnp.where(nonzero, lax.rsqrt(d2), 0.0)
    dir_ref[0, 0] = dx * inv
    dir_ref[0, 1] = dy * inv
    dir_ref[0, 2] = dz * inv

    # Cutoff mask ({0,1} float32, matching the comparison in the module).
    in_cut = dist < cut_dist_bohr
    mask = in_cut if self_send else jnp.logical_and(in_cut, nonzero)
    mask_ref[0] = mask.astype(jnp.float32)

    # Gaussian expansion: one lane-dense (TM, Ns) slab per feature.
    x = dist * distance_mul + epsilon
    for k in range(features):
        delta = x - (k * step)
        exp_ref[0, k] = jnp.exp(-(delta * delta) * inv_2s2)


def deepdft_inv_expansion(
    source, target, *, cut_dist_bohr, features=20, self_send=True,
    epsilon=1e-11, distance_mul=BOHR, tile_m=256, channels_last=True,
):
    """source: (B, Ns, 3) f32, target: (B, Nt, 3) f32.

    Returns (dist, direction, mask, expansion).  With channels_last=True
    (default) layouts match the PyTorch module:
      dist (B, Nt, Ns), direction (B, Nt, Ns, 3), mask (B, Nt, Ns),
      expansion (B, Nt, Ns, features).
    With channels_last=False the kernel-native lane-dense layouts are
    returned: direction (B, 3, Nt, Ns), expansion (B, features, Nt, Ns).
    """
    source = jnp.asarray(source, jnp.float32)
    target = jnp.asarray(target, jnp.float32)
    B, Ns, _ = source.shape
    _, Nt, _ = target.shape
    features = int(features)

    # --- choose the Nt tile so double-buffered output blocks fit VMEM -------
    tile_m = max(8, (int(tile_m) // 8) * 8)
    out_budget = 28 * 1024 * 1024       # v7x-safe budget for 2x output blocks
    if Nt <= tile_m:
        tm = Nt                         # single block; full-dim blocks are legal
    else:
        tm = tile_m
        row_bytes = (features + 5) * Ns * 4   # dist+mask+3*dir+features, f32
        while tm > 8 and 2 * tm * row_bytes > out_budget:
            tm //= 2
        tm = max(tm, 8)
    # TODO(synk): extremely large Ns would additionally need an Ns (lane) tile axis.

    nt_pad = -(-Nt // tm) * tm
    if nt_pad != Nt:
        target_p = jnp.pad(target, ((0, 0), (0, nt_pad - Nt), (0, 0)))
    else:
        target_p = target
    source_t = jnp.swapaxes(source, 1, 2)    # (B, 3, Ns): Ns on the lane axis

    out_block_bytes = (features + 5) * tm * Ns * 4
    in_block_bytes = (tm * 3 + 3 * Ns) * 4
    footprint = 2 * (out_block_bytes + in_block_bytes)   # double-buffered
    vmem_limit = int(min(48 * 2**20, max(32 * 2**20, 1.4 * footprint)))

    kernel = functools.partial(
        _pairwise_expansion_kernel,
        cut_dist_bohr=float(cut_dist_bohr),
        features=features,
        self_send=bool(self_send),
        epsilon=float(epsilon),
        distance_mul=float(distance_mul),
    )

    out_shape = (
        jax.ShapeDtypeStruct((B, nt_pad, Ns), jnp.float32),            # dist
        jax.ShapeDtypeStruct((B, 3, nt_pad, Ns), jnp.float32),         # direction
        jax.ShapeDtypeStruct((B, nt_pad, Ns), jnp.float32),            # mask
        jax.ShapeDtypeStruct((B, features, nt_pad, Ns), jnp.float32),  # expansion
    )

    grid_spec = pltpu.PrefetchScalarGridSpec(
        num_scalar_prefetch=0,
        grid=(B, nt_pad // tm),
        in_specs=[
            pl.BlockSpec((1, tm, 3), lambda b, i: (b, i, 0)),          # target
            pl.BlockSpec((1, 3, Ns), lambda b, i: (b, 0, 0)),          # source^T
        ],
        out_specs=[
            pl.BlockSpec((1, tm, Ns), lambda b, i: (b, i, 0)),
            pl.BlockSpec((1, 3, tm, Ns), lambda b, i: (b, 0, i, 0)),
            pl.BlockSpec((1, tm, Ns), lambda b, i: (b, i, 0)),
            pl.BlockSpec((1, features, tm, Ns), lambda b, i: (b, 0, i, 0)),
        ],
    )

    dist, direction, mask, expansion = pl.pallas_call(
        kernel,
        out_shape=out_shape,
        grid_spec=grid_spec,
        compiler_params=pltpu.CompilerParams(
            dimension_semantics=("parallel", "parallel"),
            vmem_limit_bytes=vmem_limit),
    )(target_p, source_t)

    dist = dist[:, :Nt]
    mask = mask[:, :Nt]
    direction = direction[:, :, :Nt]
    expansion = expansion[:, :, :Nt]
    if channels_last:
        # Layout plumbing outside the kernel to match the PyTorch module.
        direction = jnp.moveaxis(direction, 1, -1)      # (B, Nt, Ns, 3)
        expansion = jnp.moveaxis(expansion, 1, -1)      # (B, Nt, Ns, features)
    return dist, direction, mask, expansion


def _reference(source, target, *, cut_dist_bohr, features, self_send,
               epsilon, distance_mul):
    step = cut_dist_bohr / features
    diff = target[:, :, None, :] - source[:, None, :, :]
    dist = jnp.sqrt(jnp.sum(diff * diff, axis=-1))
    safe = jnp.where(dist > 0.0, dist, 1.0)
    direction = jnp.where(dist[..., None] > 0.0, diff / safe[..., None], 0.0)
    mask = dist < cut_dist_bohr
    if not self_send:
        mask = jnp.logical_and(mask, dist > 0.0)
    mu = jnp.arange(features, dtype=jnp.float32) * step
    x = dist * distance_mul + epsilon
    expansion = jnp.exp(-((x[..., None] - mu) ** 2) / (2.0 * step * step))
    return dist, direction, mask.astype(jnp.float32), expansion


if __name__ == "__main__":
    key = jax.random.PRNGKey(0)

    cut_dist_bohr = 4.0
    features = 20
    configs = [
        dict(B=2, Nt=8, Ns=8, tile_m=256),    # tiny: single block per batch
        dict(B=2, Nt=40, Ns=24, tile_m=16),   # exercises Nt tiling + padding
    ]

    for cfg in configs:
        key, k1, k2 = jax.random.split(key, 3)
        B, Nt, Ns = cfg["B"], cfg["Nt"], cfg["Ns"]
        source = jax.random.uniform(k1, (B, Ns, 3), dtype=jnp.float32) * 3.0
        target = jax.random.uniform(k2, (B, Nt, 3), dtype=jnp.float32) * 3.0
        # Force one exact self pair per batch to exercise the zero-distance path.
        target = target.at[:, 0, :].set(source[:, 0, :])

        outs = deepdft_inv_expansion(
            source, target, cut_dist_bohr=cut_dist_bohr, features=features,
            self_send=True, epsilon=1e-11, distance_mul=BOHR,
            tile_m=cfg["tile_m"])
        outs = jax.block_until_ready(outs)
        dist, direction, mask, expansion = outs

        r_dist, r_dir, r_mask, r_exp = _reference(
            source, target, cut_dist_bohr=cut_dist_bohr, features=features,
            self_send=True, epsilon=1e-11, distance_mul=BOHR)

        np.testing.assert_allclose(np.asarray(dist), np.asarray(r_dist), atol=1e-5)
        np.testing.assert_allclose(np.asarray(direction), np.asarray(r_dir), atol=1e-5)
        np.testing.assert_allclose(np.asarray(mask), np.asarray(r_mask), atol=1e-6)
        np.testing.assert_allclose(np.asarray(expansion), np.asarray(r_exp), atol=1e-5)

    print("KERNEL_OK")
</pallas_src>

<mosaic_0001>
module attributes {stable_mosaic.version = 11 : i64} {
  func.func @_pairwise_expansion_kernel(%arg0: i32, %arg1: i32, %arg2: memref<1x8x3xf32, #tpu.memory_space<vmem>>, %arg3: memref<1x3x8xf32, #tpu.memory_space<vmem>>, %arg4: memref<1x8x8xf32, #tpu.memory_space<vmem>>, %arg5: memref<1x3x8x8xf32, #tpu.memory_space<vmem>>, %arg6: memref<1x8x8xf32, #tpu.memory_space<vmem>>, %arg7: memref<1x20x8x8xf32, #tpu.memory_space<vmem>>) attributes {dimension_semantics = [#tpu.dimension_semantics<parallel>, #tpu.dimension_semantics<parallel>], iteration_bounds = array<i64: 2, 1>, scalar_prefetch = 0 : i64, scratch_operands = 0 : i64, tpu.core_type = #tpu.core_type<tc>, window_params = [{transform_indices = @transform_0, window_bounds = array<i64: 1, 8, 3>}, {transform_indices = @transform_1, window_bounds = array<i64: 1, 3, 8>}, {transform_indices = @transform_2, window_bounds = array<i64: 1, 8, 8>}, {transform_indices = @transform_3, window_bounds = array<i64: 1, 3, 8, 8>}, {transform_indices = @transform_4, window_bounds = array<i64: 1, 8, 8>}, {transform_indices = @transform_5, window_bounds = array<i64: 1, 20, 8, 8>}]} {
    %c0 = arith.constant 0 : index
    %c0_0 = arith.constant 0 : index
    %c0_1 = arith.constant 0 : index
    %0 = vector.load %arg2[%c0, %c0_0, %c0_1] : memref<1x8x3xf32, #tpu.memory_space<vmem>>, vector<1x8x3xf32>
    %1 = vector.shape_cast %0 : vector<1x8x3xf32> to vector<8x3xf32>
    %c0_2 = arith.constant 0 : index
    %c0_3 = arith.constant 0 : index
    %c0_4 = arith.constant 0 : index
    %2 = vector.load %arg3[%c0_2, %c0_3, %c0_4] : memref<1x3x8xf32, #tpu.memory_space<vmem>>, vector<1x3x8xf32>
    %3 = vector.shape_cast %2 : vector<1x3x8xf32> to vector<3x8xf32>
    %4 = vector.extract_strided_slice %1 {offsets = [0, 0], sizes = [8, 1], strides = [1, 1]} : vector<8x3xf32> to vector<8x1xf32>
    %5 = vector.extract_strided_slice %3 {offsets = [0, 0], sizes = [1, 8], strides = [1, 1]} : vector<3x8xf32> to vector<1x8xf32>
    %6 = vector.broadcast %4 : vector<8x1xf32> to vector<8x8xf32>
    %7 = vector.broadcast %5 : vector<1x8xf32> to vector<8x8xf32>
    %8 = arith.subf %6, %7 : vector<8x8xf32>
    %9 = vector.extract_strided_slice %1 {offsets = [0, 1], sizes = [8, 1], strides = [1, 1]} : vector<8x3xf32> to vector<8x1xf32>
    %10 = vector.extract_strided_slice %3 {offsets = [1, 0], sizes = [1, 8], strides = [1, 1]} : vector<3x8xf32> to vector<1x8xf32>
    %11 = vector.broadcast %9 : vector<8x1xf32> to vector<8x8xf32>
    %12 = vector.broadcast %10 : vector<1x8xf32> to vector<8x8xf32>
    %13 = arith.subf %11, %12 : vector<8x8xf32>
    %14 = vector.extract_strided_slice %1 {offsets = [0, 2], sizes = [8, 1], strides = [1, 1]} : vector<8x3xf32> to vector<8x1xf32>
    %15 = vector.extract_strided_slice %3 {offsets = [2, 0], sizes = [1, 8], strides = [1, 1]} : vector<3x8xf32> to vector<1x8xf32>
    %16 = vector.broadcast %14 : vector<8x1xf32> to vector<8x8xf32>
    %17 = vector.broadcast %15 : vector<1x8xf32> to vector<8x8xf32>
    %18 = arith.subf %16, %17 : vector<8x8xf32>
    %19 = arith.mulf %8, %8 : vector<8x8xf32>
    %20 = arith.mulf %13, %13 : vector<8x8xf32>
    %21 = arith.addf %19, %20 : vector<8x8xf32>
    %22 = arith.mulf %18, %18 : vector<8x8xf32>
    %23 = arith.addf %21, %22 : vector<8x8xf32>
    %cst = arith.constant 0.000000e+00 : f32
    %24 = vector.broadcast %cst : f32 to vector<8x8xf32>
    %25 = arith.cmpf ogt, %23, %24 : vector<8x8xf32>
    %26 = math.sqrt %23 : vector<8x8xf32>
    %c0_5 = arith.constant 0 : index
    %c0_6 = arith.constant 0 : index
    %c0_7 = arith.constant 0 : index
    %27 = vector.load %arg4[%c0_5, %c0_6, %c0_7] : memref<1x8x8xf32, #tpu.memory_space<vmem>>, vector<1x8x8xf32>
    %28 = vector.shape_cast %27 : vector<1x8x8xf32> to vector<8x8xf32>
    %29 = vector.shape_cast %26 : vector<8x8xf32> to vector<1x8x8xf32>
    tpu.vector_store %arg4[%c0_5, %c0_6, %c0_7], %29 {strides = array<i32>} : memref<1x8x8xf32, #tpu.memory_space<vmem>>, vector<1x8x8xf32>,
    %30 = math.rsqrt %23 : vector<8x8xf32>
    %cst_8 = arith.constant 0.000000e+00 : f32
    %31 = vector.broadcast %cst_8 : f32 to vector<8x8xf32>
    %32 = arith.select %25, %30, %31 : vector<8x8xi1>, vector<8x8xf32>
    %33 = arith.mulf %8, %32 : vector<8x8xf32>
    %c0_9 = arith.constant 0 : index
    %c0_10 = arith.constant 0 : index
    %c0_11 = arith.constant 0 : index
    %c0_12 = arith.constant 0 : index
    %34 = vector.load %arg5[%c0_9, %c0_10, %c0_11, %c0_12] : memref<1x3x8x8xf32, #tpu.memory_space<vmem>>, vector<1x1x8x8xf32>
    %35 = vector.shape_cast %34 : vector<1x1x8x8xf32> to vector<8x8xf32>
    %36 = vector.shape_cast %33 : vector<8x8xf32> to vector<1x1x8x8xf32>
    tpu.vector_store %arg5[%c0_9, %c0_10, %c0_11, %c0_12], %36 {strides = array<i32>} : memref<1x3x8x8xf32, #tpu.memory_space<vmem>>, vector<1x1x8x8xf32>,
    %37 = arith.mulf %13, %32 : vector<8x8xf32>
    %c0_13 = arith.constant 0 : index
    %c1 = arith.constant 1 : index
    %c0_14 = arith.constant 0 : index
    %c0_15 = arith.constant 0 : index
    %38 = vector.load %arg5[%c0_13, %c1, %c0_14, %c0_15] : memref<1x3x8x8xf32, #tpu.memory_space<vmem>>, vector<1x1x8x8xf32>
    %39 = vector.shape_cast %38 : vector<1x1x8x8xf32> to vector<8x8xf32>
    %40 = vector.shape_cast %37 : vector<8x8xf32> to vector<1x1x8x8xf32>
    tpu.vector_store %arg5[%c0_13, %c1, %c0_14, %c0_15], %40 {strides = array<i32>} : memref<1x3x8x8xf32, #tpu.memory_space<vmem>>, vector<1x1x8x8xf32>,
    %41 = arith.mulf %18, %32 : vector<8x8xf32>
    %c0_16 = arith.constant 0 : index
    %c2 = arith.constant 2 : index
    %c0_17 = arith.constant 0 : index
    %c0_18 = arith.constant 0 : index
    %42 = vector.load %arg5[%c0_16, %c2, %c0_17, %c0_18] : memref<1x3x8x8xf32, #tpu.memory_space<vmem>>, vector<1x1x8x8xf32>
    %43 = vector.shape_cast %42 : vector<1x1x8x8xf32> to vector<8x8xf32>
    %44 = vector.shape_cast %41 : vector<8x8xf32> to vector<1x1x8x8xf32>
    tpu.vector_store %arg5[%c0_16, %c2, %c0_17, %c0_18], %44 {strides = array<i32>} : memref<1x3x8x8xf32, #tpu.memory_space<vmem>>, vector<1x1x8x8xf32>,
    %cst_19 = arith.constant 4.000000e+00 : f32
    %45 = vector.broadcast %cst_19 : f32 to vector<8x8xf32>
    %46 = arith.cmpf olt, %26, %45 : vector<8x8xf32>
    %47 = arith.extui %46 : vector<8x8xi1> to vector<8x8xi32>
    %48 = arith.sitofp %47 : vector<8x8xi32> to vector<8x8xf32>
    %c0_20 = arith.constant 0 : index
    %c0_21 = arith.constant 0 : index
    %c0_22 = arith.constant 0 : index
    %49 = vector.load %arg6[%c0_20, %c0_21, %c0_22] : memref<1x8x8xf32, #tpu.memory_space<vmem>>, vector<1x8x8xf32>
    %50 = vector.shape_cast %49 : vector<1x8x8xf32> to vector<8x8xf32>
    %51 = vector.shape_cast %48 : vector<8x8xf32> to vector<1x8x8xf32>
    tpu.vector_store %arg6[%c0_20, %c0_21, %c0_22], %51 {strides = array<i32>} : memref<1x8x8xf32, #tpu.memory_space<vmem>>, vector<1x8x8xf32>,
    %cst_23 = arith.constant 0.529177189 : f32
    %52 = vector.broadcast %cst_23 : f32 to vector<8x8xf32>
    %53 = arith.mulf %26, %52 : vector<8x8xf32>
    %cst_24 = arith.constant 9.99999996E-12 : f32
    %54 = vector.broadcast %cst_24 : f32 to vector<8x8xf32>
    %55 = arith.addf %53, %54 : vector<8x8xf32>
    %cst_25 = arith.constant 0.000000e+00 : f32
    %56 = vector.broadcast %cst_25 : f32 to vector<8x8xf32>
    %57 = arith.subf %55, %56 : vector<8x8xf32>
    %58 = arith.mulf %57, %57 : vector<8x8xf32>
    %cst_26 = arith.constant 0.000000e+00 : f32
    %59 = vector.broadcast %cst_26 : f32 to vector<8x8xf32>
    %60 = arith.subf %59, %58 : vector<8x8xf32>
    %cst_27 = arith.constant 1.250000e+01 : f32
    %61 = vector.broadcast %cst_27 : f32 to vector<8x8xf32>
    %62 = arith.mulf %60, %61 : vector<8x8xf32>
    %63 = math.exp %62 : vector<8x8xf32>
    %c0_28 = arith.constant 0 : index
    %c0_29 = arith.constant 0 : index
    %c0_30 = arith.constant 0 : index
    %c0_31 = arith.constant 0 : index
    %64 = vector.load %arg7[%c0_28, %c0_29, %c0_30, %c0_31] : memref<1x20x8x8xf32, #tpu.memory_space<vmem>>, vector<1x1x8x8xf32>
    %65 = vector.shape_cast %64 : vector<1x1x8x8xf32> to vector<8x8xf32>
    %66 = vector.shape_cast %63 : vector<8x8xf32> to vector<1x1x8x8xf32>
    tpu.vector_store %arg7[%c0_28, %c0_29, %c0_30, %c0_31], %66 {strides = array<i32>} : memref<1x20x8x8xf32, #tpu.memory_space<vmem>>, vector<1x1x8x8xf32>,
    %cst_32 = arith.constant 2.000000e-01 : f32
    %67 = vector.broadcast %cst_32 : f32 to vector<8x8xf32>
    %68 = arith.subf %55, %67 : vector<8x8xf32>
    %69 = arith.mulf %68, %68 : vector<8x8xf32>
    %cst_33 = arith.constant 0.000000e+00 : f32
    %70 = vector.broadcast %cst_33 : f32 to vector<8x8xf32>
    %71 = arith.subf %70, %69 : vector<8x8xf32>
    %cst_34 = arith.constant 1.250000e+01 : f32
    %72 = vector.broadcast %cst_34 : f32 to vector<8x8xf32>
    %73 = arith.mulf %71, %72 : vector<8x8xf32>
    %74 = math.exp %73 : vector<8x8xf32>
    %c0_35 = arith.constant 0 : index
    %c1_36 = arith.constant 1 : index
    %c0_37 = arith.constant 0 : index
    %c0_38 = arith.constant 0 : index
    %75 = vector.load %arg7[%c0_35, %c1_36, %c0_37, %c0_38] : memref<1x20x8x8xf32, #tpu.memory_space<vmem>>, vector<1x1x8x8xf32>
    %76 = vector.shape_cast %75 : vector<1x1x8x8xf32> to vector<8x8xf32>
    %77 = vector.shape_cast %74 : vector<8x8xf32> to vector<1x1x8x8xf32>
    tpu.vector_store %arg7[%c0_35, %c1_36, %c0_37, %c0_38], %77 {strides = array<i32>} : memref<1x20x8x8xf32, #tpu.memory_space<vmem>>, vector<1x1x8x8xf32>,
    %cst_39 = arith.constant 4.000000e-01 : f32
    %78 = vector.broadcast %cst_39 : f32 to vector<8x8xf32>
    %79 = arith.subf %55, %78 : vector<8x8xf32>
    %80 = arith.mulf %79, %79 : vector<8x8xf32>
    %cst_40 = arith.constant 0.000000e+00 : f32
    %81 = vector.broadcast %cst_40 : f32 to vector<8x8xf32>
    %82 = arith.subf %81, %80 : vector<8x8xf32>
    %cst_41 = arith.constant 1.250000e+01 : f32
    %83 = vector.broadcast %cst_41 : f32 to vector<8x8xf32>
    %84 = arith.mulf %82, %83 : vector<8x8xf32>
    %85 = math.exp %84 : vector<8x8xf32>
    %c0_42 = arith.constant 0 : index
    %c2_43 = arith.constant 2 : index
    %c0_44 = arith.constant 0 : index
    %c0_45 = arith.constant 0 : index
    %86 = vector.load %arg7[%c0_42, %c2_43, %c0_44, %c0_45] : memref<1x20x8x8xf32, #tpu.memory_space<vmem>>, vector<1x1x8x8xf32>
    %87 = vector.shape_cast %86 : vector<1x1x8x8xf32> to vector<8x8xf32>
    %88 = vector.shape_cast %85 : vector<8x8xf32> to vector<1x1x8x8xf32>
    tpu.vector_store %arg7[%c0_42, %c2_43, %c0_44, %c0_45], %88 {strides = array<i32>} : memref<1x20x8x8xf32, #tpu.memory_space<vmem>>, vector<1x1x8x8xf32>,
    %cst_46 = arith.constant 6.000000e-01 : f32
    %89 = vector.broadcast %cst_46 : f32 to vector<8x8xf32>
    %90 = arith.subf %55, %89 : vector<8x8xf32>
    %91 = arith.mulf %90, %90 : vector<8x8xf32>
    %cst_47 = arith.constant 0.000000e+00 : f32
    %92 = vector.broadcast %cst_47 : f32 to vector<8x8xf32>
    %93 = arith.subf %92, %91 : vector<8x8xf32>
    %cst_48 = arith.constant 1.250000e+01 : f32
    %94 = vector.broadcast %cst_48 : f32 to vector<8x8xf32>
    %95 = arith.mulf %93, %94 : vector<8x8xf32>
    %96 = math.exp %95 : vector<8x8xf32>
    %c0_49 = arith.constant 0 : index
    %c3 = arith.constant 3 : index
    %c0_50 = arith.constant 0 : index
    %c0_51 = arith.constant 0 : index
    %97 = vector.load %arg7[%c0_49, %c3, %c0_50, %c0_51] : memref<1x20x8x8xf32, #tpu.memory_space<vmem>>, vector<1x1x8x8xf32>
    %98 = vector.shape_cast %97 : vector<1x1x8x8xf32> to vector<8x8xf32>
    %99 = vector.shape_cast %96 : vector<8x8xf32> to vector<1x1x8x8xf32>
    tpu.vector_store %arg7[%c0_49, %c3, %c0_50, %c0_51], %99 {strides = array<i32>} : memref<1x20x8x8xf32, #tpu.memory_space<vmem>>, vector<1x1x8x8xf32>,
    %cst_52 = arith.constant 8.000000e-01 : f32
    %100 = vector.broadcast %cst_52 : f32 to vector<8x8xf32>
    %101 = arith.subf %55, %100 : vector<8x8xf32>
    %102 = arith.mulf %101, %101 : vector<8x8xf32>
    %cst_53 = arith.constant 0.000000e+00 : f32
    %103 = vector.broadcast %cst_53 : f32 to vector<8x8xf32>
    %104 = arith.subf %103, %102 : vector<8x8xf32>
    %cst_54 = arith.constant 1.250000e+01 : f32
    %105 = vector.broadcast %cst_54 : f32 to vector<8x8xf32>
    %106 = arith.mulf %104, %105 : vector<8x8xf32>
    %107 = math.exp %106 : vector<8x8xf32>
    %c0_55 = arith.constant 0 : index
    %c4 = arith.constant 4 : index
    %c0_56 = arith.constant 0 : index
    %c0_57 = arith.constant 0 : index
    %108 = vector.load %arg7[%c0_55, %c4, %c0_56, %c0_57] : memref<1x20x8x8xf32, #tpu.memory_space<vmem>>, vector<1x1x8x8xf32>
    %109 = vector.shape_cast %108 : vector<1x1x8x8xf32> to vector<8x8xf32>
    %110 = vector.shape_cast %107 : vector<8x8xf32> to vector<1x1x8x8xf32>
    tpu.vector_store %arg7[%c0_55, %c4, %c0_56, %c0_57], %110 {strides = array<i32>} : memref<1x20x8x8xf32, #tpu.memory_space<vmem>>, vector<1x1x8x8xf32>,
    %cst_58 = arith.constant 1.000000e+00 : f32
    %111 = vector.broadcast %cst_58 : f32 to vector<8x8xf32>
    %112 = arith.subf %55, %111 : vector<8x8xf32>
    %113 = arith.mulf %112, %112 : vector<8x8xf32>
    %cst_59 = arith.constant 0.000000e+00 : f32
    %114 = vector.broadcast %cst_59 : f32 to vector<8x8xf32>
    %115 = arith.subf %114, %113 : vector<8x8xf32>
    %cst_60 = arith.constant 1.250000e+01 : f32
    %116 = vector.broadcast %cst_60 : f32 to vector<8x8xf32>
    %117 = arith.mulf %115, %116 : vector<8x8xf32>
    %118 = math.exp %117 : vector<8x8xf32>
    %c0_61 = arith.constant 0 : index
    %c5 = arith.constant 5 : index
    %c0_62 = arith.constant 0 : index
    %c0_63 = arith.constant 0 : index
    %119 = vector.load %arg7[%c0_61, %c5, %c0_62, %c0_63] : memref<1x20x8x8xf32, #tpu.memory_space<vmem>>, vector<1x1x8x8xf32>
    %120 = vector.shape_cast %119 : vector<1x1x8x8xf32> to vector<8x8xf32>
    %121 = vector.shape_cast %118 : vector<8x8xf32> to vector<1x1x8x8xf32>
    tpu.vector_store %arg7[%c0_61, %c5, %c0_62, %c0_63], %121 {strides = array<i32>} : memref<1x20x8x8xf32, #tpu.memory_space<vmem>>, vector<1x1x8x8xf32>,
    %cst_64 = arith.constant 1.200000e+00 : f32
    %122 = vector.broadcast %cst_64 : f32 to vector<8x8xf32>
    %123 = arith.subf %55, %122 : vector<8x8xf32>
    %124 = arith.mulf %123, %123 : vector<8x8xf32>
    %cst_65 = arith.constant 0.000000e+00 : f32
    %125 = vector.broadcast %cst_65 : f32 to vector<8x8xf32>
    %126 = arith.subf %125, %124 : vector<8x8xf32>
    %cst_66 = arith.constant 1.250000e+01 : f32
    %127 = vector.broadcast %cst_66 : f32 to vector<8x8xf32>
    %128 = arith.mulf %126, %127 : vector<8x8xf32>
    %129 = math.exp %128 : vector<8x8xf32>
    %c0_67 = arith.constant 0 : index
    %c6 = arith.constant 6 : index
    %c0_68 = arith.constant 0 : index
    %c0_69 = arith.constant 0 : index
    %130 = vector.load %arg7[%c0_67, %c6, %c0_68, %c0_69] : memref<1x20x8x8xf32, #tpu.memory_space<vmem>>, vector<1x1x8x8xf32>
    %131 = vector.shape_cast %130 : vector<1x1x8x8xf32> to vector<8x8xf32>
    %132 = vector.shape_cast %129 : vector<8x8xf32> to vector<1x1x8x8xf32>
    tpu.vector_store %arg7[%c0_67, %c6, %c0_68, %c0_69], %132 {strides = array<i32>} : memref<1x20x8x8xf32, #tpu.memory_space<vmem>>, vector<1x1x8x8xf32>,
    %cst_70 = arith.constant 1.400000e+00 : f32
    %133 = vector.broadcast %cst_70 : f32 to vector<8x8xf32>
    %134 = arith.subf %55, %133 : vector<8x8xf32>
    %135 = arith.mulf %134, %134 : vector<8x8xf32>
    %cst_71 = arith.constant 0.000000e+00 : f32
    %136 = vector.broadcast %cst_71 : f32 to vector<8x8xf32>
    %137 = arith.subf %136, %135 : vector<8x8xf32>
    %cst_72 = arith.constant 1.250000e+01 : f32
    %138 = vector.broadcast %cst_72 : f32 to vector<8x8xf32>
    %139 = arith.mulf %137, %138 : vector<8x8xf32>
    %140 = math.exp %139 : vector<8x8xf32>
    %c0_73 = arith.constant 0 : index
    %c7 = arith.constant 7 : index
    %c0_74 = arith.constant 0 : index
    %c0_75 = arith.constant 0 : index
    %141 = vector.load %arg7[%c0_73, %c7, %c0_74, %c0_75] : memref<1x20x8x8xf32, #tpu.memory_space<vmem>>, vector<1x1x8x8xf32>
    %142 = vector.shape_cast %141 : vector<1x1x8x8xf32> to vector<8x8xf32>
    %143 = vector.shape_cast %140 : vector<8x8xf32> to vector<1x1x8x8xf32>
    tpu.vector_store %arg7[%c0_73, %c7, %c0_74, %c0_75], %143 {strides = array<i32>} : memref<1x20x8x8xf32, #tpu.memory_space<vmem>>, vector<1x1x8x8xf32>,
    %cst_76 = arith.constant 1.600000e+00 : f32
    %144 = vector.broadcast %cst_76 : f32 to vector<8x8xf32>
    %145 = arith.subf %55, %144 : vector<8x8xf32>
    %146 = arith.mulf %145, %145 : vector<8x8xf32>
    %cst_77 = arith.constant 0.000000e+00 : f32
    %147 = vector.broadcast %cst_77 : f32 to vector<8x8xf32>
    %148 = arith.subf %147, %146 : vector<8x8xf32>
    %cst_78 = arith.constant 1.250000e+01 : f32
    %149 = vector.broadcast %cst_78 : f32 to vector<8x8xf32>
    %150 = arith.mulf %148, %149 : vector<8x8xf32>
    %151 = math.exp %150 : vector<8x8xf32>
    %c0_79 = arith.constant 0 : index
    %c8 = arith.constant 8 : index
    %c0_80 = arith.constant 0 : index
    %c0_81 = arith.constant 0 : index
    %152 = vector.load %arg7[%c0_79, %c8, %c0_80, %c0_81] : memref<1x20x8x8xf32, #tpu.memory_space<vmem>>, vector<1x1x8x8xf32>
    %153 = vector.shape_cast %152 : vector<1x1x8x8xf32> to vector<8x8xf32>
    %154 = vector.shape_cast %151 : vector<8x8xf32> to vector<1x1x8x8xf32>
    tpu.vector_store %arg7[%c0_79, %c8, %c0_80, %c0_81], %154 {strides = array<i32>} : memref<1x20x8x8xf32, #tpu.memory_space<vmem>>, vector<1x1x8x8xf32>,
    %cst_82 = arith.constant 1.800000e+00 : f32
    %155 = vector.broadcast %cst_82 : f32 to vector<8x8xf32>
    %156 = arith.subf %55, %155 : vector<8x8xf32>
    %157 = arith.mulf %156, %156 : vector<8x8xf32>
    %cst_83 = arith.constant 0.000000e+00 : f32
    %158 = vector.broadcast %cst_83 : f32 to vector<8x8xf32>
    %159 = arith.subf %158, %157 : vector<8x8xf32>
    %cst_84 = arith.constant 1.250000e+01 : f32
    %160 = vector.broadcast %cst_84 : f32 to vector<8x8xf32>
    %161 = arith.mulf %159, %160 : vector<8x8xf32>
    %162 = math.exp %161 : vector<8x8xf32>
    %c0_85 = arith.constant 0 : index
    %c9 = arith.constant 9 : index
    %c0_86 = arith.constant 0 : index
    %c0_87 = arith.constant 0 : index
    %163 = vector.load %arg7[%c0_85, %c9, %c0_86, %c0_87] : memref<1x20x8x8xf32, #tpu.memory_space<vmem>>, vector<1x1x8x8xf32>
    %164 = vector.shape_cast %163 : vector<1x1x8x8xf32> to vector<8x8xf32>
    %165 = vector.shape_cast %162 : vector<8x8xf32> to vector<1x1x8x8xf32>
    tpu.vector_store %arg7[%c0_85, %c9, %c0_86, %c0_87], %165 {strides = array<i32>} : memref<1x20x8x8xf32, #tpu.memory_space<vmem>>, vector<1x1x8x8xf32>,
    %cst_88 = arith.constant 2.000000e+00 : f32
    %166 = vector.broadcast %cst_88 : f32 to vector<8x8xf32>
    %167 = arith.subf %55, %166 : vector<8x8xf32>
    %168 = arith.mulf %167, %167 : vector<8x8xf32>
    %cst_89 = arith.constant 0.000000e+00 : f32
    %169 = vector.broadcast %cst_89 : f32 to vector<8x8xf32>
    %170 = arith.subf %169, %168 : vector<8x8xf32>
    %cst_90 = arith.constant 1.250000e+01 : f32
    %171 = vector.broadcast %cst_90 : f32 to vector<8x8xf32>
    %172 = arith.mulf %170, %171 : vector<8x8xf32>
    %173 = math.exp %172 : vector<8x8xf32>
    %c0_91 = arith.constant 0 : index
    %c10 = arith.constant 10 : index
    %c0_92 = arith.constant 0 : index
    %c0_93 = arith.constant 0 : index
    %174 = vector.load %arg7[%c0_91, %c10, %c0_92, %c0_93] : memref<1x20x8x8xf32, #tpu.memory_space<vmem>>, vector<1x1x8x8xf32>
    %175 = vector.shape_cast %174 : vector<1x1x8x8xf32> to vector<8x8xf32>
    %176 = vector.shape_cast %173 : vector<8x8xf32> to vector<1x1x8x8xf32>
    tpu.vector_store %arg7[%c0_91, %c10, %c0_92, %c0_93], %176 {strides = array<i32>} : memref<1x20x8x8xf32, #tpu.memory_space<vmem>>, vector<1x1x8x8xf32>,
    %cst_94 = arith.constant 2.200000e+00 : f32
    %177 = vector.broadcast %cst_94 : f32 to vector<8x8xf32>
    %178 = arith.subf %55, %177 : vector<8x8xf32>
    %179 = arith.mulf %178, %178 : vector<8x8xf32>
    %cst_95 = arith.constant 0.000000e+00 : f32
    %180 = vector.broadcast %cst_95 : f32 to vector<8x8xf32>
    %181 = arith.subf %180, %179 : vector<8x8xf32>
    %cst_96 = arith.constant 1.250000e+01 : f32
    %182 = vector.broadcast %cst_96 : f32 to vector<8x8xf32>
    %183 = arith.mulf %181, %182 : vector<8x8xf32>
    %184 = math.exp %183 : vector<8x8xf32>
    %c0_97 = arith.constant 0 : index
    %c11 = arith.constant 11 : index
    %c0_98 = arith.constant 0 : index
    %c0_99 = arith.constant 0 : index
    %185 = vector.load %arg7[%c0_97, %c11, %c0_98, %c0_99] : memref<1x20x8x8xf32, #tpu.memory_space<vmem>>, vector<1x1x8x8xf32>
    %186 = vector.shape_cast %185 : vector<1x1x8x8xf32> to vector<8x8xf32>
    %187 = vector.shape_cast %184 : vector<8x8xf32> to vector<1x1x8x8xf32>
    tpu.vector_store %arg7[%c0_97, %c11, %c0_98, %c0_99], %187 {strides = array<i32>} : memref<1x20x8x8xf32, #tpu.memory_space<vmem>>, vector<1x1x8x8xf32>,
    %cst_100 = arith.constant 2.400000e+00 : f32
    %188 = vector.broadcast %cst_100 : f32 to vector<8x8xf32>
    %189 = arith.subf %55, %188 : vector<8x8xf32>
    %190 = arith.mulf %189, %189 : vector<8x8xf32>
    %cst_101 = arith.constant 0.000000e+00 : f32
    %191 = vector.broadcast %cst_101 : f32 to vector<8x8xf32>
    %192 = arith.subf %191, %190 : vector<8x8xf32>
    %cst_102 = arith.constant 1.250000e+01 : f32
    %193 = vector.broadcast %cst_102 : f32 to vector<8x8xf32>
    %194 = arith.mulf %192, %193 : vector<8x8xf32>
    %195 = math.exp %194 : vector<8x8xf32>
    %c0_103 = arith.constant 0 : index
    %c12 = arith.constant 12 : index
    %c0_104 = arith.constant 0 : index
    %c0_105 = arith.constant 0 : index
    %196 = vector.load %arg7[%c0_103, %c12, %c0_104, %c0_105] : memref<1x20x8x8xf32, #tpu.memory_space<vmem>>, vector<1x1x8x8xf32>
    %197 = vector.shape_cast %196 : vector<1x1x8x8xf32> to vector<8x8xf32>
    %198 = vector.shape_cast %195 : vector<8x8xf32> to vector<1x1x8x8xf32>
    tpu.vector_store %arg7[%c0_103, %c12, %c0_104, %c0_105], %198 {strides = array<i32>} : memref<1x20x8x8xf32, #tpu.memory_space<vmem>>, vector<1x1x8x8xf32>,
    %cst_106 = arith.constant 2.600000e+00 : f32
    %199 = vector.broadcast %cst_106 : f32 to vector<8x8xf32>
    %200 = arith.subf %55, %199 : vector<8x8xf32>
    %201 = arith.mulf %200, %200 : vector<8x8xf32>
    %cst_107 = arith.constant 0.000000e+00 : f32
    %202 = vector.broadcast %cst_107 : f32 to vector<8x8xf32>
    %203 = arith.subf %202, %201 : vector<8x8xf32>
    %cst_108 = arith.constant 1.250000e+01 : f32
    %204 = vector.broadcast %cst_108 : f32 to vector<8x8xf32>
    %205 = arith.mulf %203, %204 : vector<8x8xf32>
    %206 = math.exp %205 : vector<8x8xf32>
    %c0_109 = arith.constant 0 : index
    %c13 = arith.constant 13 : index
    %c0_110 = arith.constant 0 : index
    %c0_111 = arith.constant 0 : index
    %207 = vector.load %arg7[%c0_109, %c13, %c0_110, %c0_111] : memref<1x20x8x8xf32, #tpu.memory_space<vmem>>, vector<1x1x8x8xf32>
    %208 = vector.shape_cast %207 : vector<1x1x8x8xf32> to vector<8x8xf32>
    %209 = vector.shape_cast %206 : vector<8x8xf32> to vector<1x1x8x8xf32>
    tpu.vector_store %arg7[%c0_109, %c13, %c0_110, %c0_111], %209 {strides = array<i32>} : memref<1x20x8x8xf32, #tpu.memory_space<vmem>>, vector<1x1x8x8xf32>,
    %cst_112 = arith.constant 2.800000e+00 : f32
    %210 = vector.broadcast %cst_112 : f32 to vector<8x8xf32>
    %211 = arith.subf %55, %210 : vector<8x8xf32>
    %212 = arith.mulf %211, %211 : vector<8x8xf32>
    %cst_113 = arith.constant 0.000000e+00 : f32
    %213 = vector.broadcast %cst_113 : f32 to vector<8x8xf32>
    %214 = arith.subf %213, %212 : vector<8x8xf32>
    %cst_114 = arith.constant 1.250000e+01 : f32
    %215 = vector.broadcast %cst_114 : f32 to vector<8x8xf32>
    %216 = arith.mulf %214, %215 : vector<8x8xf32>
    %217 = math.exp %216 : vector<8x8xf32>
    %c0_115 = arith.constant 0 : index
    %c14 = arith.constant 14 : index
    %c0_116 = arith.constant 0 : index
    %c0_117 = arith.constant 0 : index
    %218 = vector.load %arg7[%c0_115, %c14, %c0_116, %c0_117] : memref<1x20x8x8xf32, #tpu.memory_space<vmem>>, vector<1x1x8x8xf32>
    %219 = vector.shape_cast %218 : vector<1x1x8x8xf32> to vector<8x8xf32>
    %220 = vector.shape_cast %217 : vector<8x8xf32> to vector<1x1x8x8xf32>
    tpu.vector_store %arg7[%c0_115, %c14, %c0_116, %c0_117], %220 {strides = array<i32>} : memref<1x20x8x8xf32, #tpu.memory_space<vmem>>, vector<1x1x8x8xf32>,
    %cst_118 = arith.constant 3.000000e+00 : f32
    %221 = vector.broadcast %cst_118 : f32 to vector<8x8xf32>
    %222 = arith.subf %55, %221 : vector<8x8xf32>
    %223 = arith.mulf %222, %222 : vector<8x8xf32>
    %cst_119 = arith.constant 0.000000e+00 : f32
    %224 = vector.broadcast %cst_119 : f32 to vector<8x8xf32>
    %225 = arith.subf %224, %223 : vector<8x8xf32>
    %cst_120 = arith.constant 1.250000e+01 : f32
    %226 = vector.broadcast %cst_120 : f32 to vector<8x8xf32>
    %227 = arith.mulf %225, %226 : vector<8x8xf32>
    %228 = math.exp %227 : vector<8x8xf32>
    %c0_121 = arith.constant 0 : index
    %c15 = arith.constant 15 : index
    %c0_122 = arith.constant 0 : index
    %c0_123 = arith.constant 0 : index
    %229 = vector.load %arg7[%c0_121, %c15, %c0_122, %c0_123] : memref<1x20x8x8xf32, #tpu.memory_space<vmem>>, vector<1x1x8x8xf32>
    %230 = vector.shape_cast %229 : vector<1x1x8x8xf32> to vector<8x8xf32>
    %231 = vector.shape_cast %228 : vector<8x8xf32> to vector<1x1x8x8xf32>
    tpu.vector_store %arg7[%c0_121, %c15, %c0_122, %c0_123], %231 {strides = array<i32>} : memref<1x20x8x8xf32, #tpu.memory_space<vmem>>, vector<1x1x8x8xf32>,
    %cst_124 = arith.constant 3.200000e+00 : f32
    %232 = vector.broadcast %cst_124 : f32 to vector<8x8xf32>
    %233 = arith.subf %55, %232 : vector<8x8xf32>
    %234 = arith.mulf %233, %233 : vector<8x8xf32>
    %cst_125 = arith.constant 0.000000e+00 : f32
    %235 = vector.broadcast %cst_125 : f32 to vector<8x8xf32>
    %236 = arith.subf %235, %234 : vector<8x8xf32>
    %cst_126 = arith.constant 1.250000e+01 : f32
    %237 = vector.broadcast %cst_126 : f32 to vector<8x8xf32>
    %238 = arith.mulf %236, %237 : vector<8x8xf32>
    %239 = math.exp %238 : vector<8x8xf32>
    %c0_127 = arith.constant 0 : index
    %c16 = arith.constant 16 : index
    %c0_128 = arith.constant 0 : index
    %c0_129 = arith.constant 0 : index
    %240 = vector.load %arg7[%c0_127, %c16, %c0_128, %c0_129] : memref<1x20x8x8xf32, #tpu.memory_space<vmem>>, vector<1x1x8x8xf32>
    %241 = vector.shape_cast %240 : vector<1x1x8x8xf32> to vector<8x8xf32>
    %242 = vector.shape_cast %239 : vector<8x8xf32> to vector<1x1x8x8xf32>
    tpu.vector_store %arg7[%c0_127, %c16, %c0_128, %c0_129], %242 {strides = array<i32>} : memref<1x20x8x8xf32, #tpu.memory_space<vmem>>, vector<1x1x8x8xf32>,
    %cst_130 = arith.constant 3.400000e+00 : f32
    %243 = vector.broadcast %cst_130 : f32 to vector<8x8xf32>
    %244 = arith.subf %55, %243 : vector<8x8xf32>
    %245 = arith.mulf %244, %244 : vector<8x8xf32>
    %cst_131 = arith.constant 0.000000e+00 : f32
    %246 = vector.broadcast %cst_131 : f32 to vector<8x8xf32>
    %247 = arith.subf %246, %245 : vector<8x8xf32>
    %cst_132 = arith.constant 1.250000e+01 : f32
    %248 = vector.broadcast %cst_132 : f32 to vector<8x8xf32>
    %249 = arith.mulf %247, %248 : vector<8x8xf32>
    %250 = math.exp %249 : vector<8x8xf32>
    %c0_133 = arith.constant 0 : index
    %c17 = arith.constant 17 : index
    %c0_134 = arith.constant 0 : index
    %c0_135 = arith.constant 0 : index
    %251 = vector.load %arg7[%c0_133, %c17, %c0_134, %c0_135] : memref<1x20x8x8xf32, #tpu.memory_space<vmem>>, vector<1x1x8x8xf32>
    %252 = vector.shape_cast %251 : vector<1x1x8x8xf32> to vector<8x8xf32>
    %253 = vector.shape_cast %250 : vector<8x8xf32> to vector<1x1x8x8xf32>
    tpu.vector_store %arg7[%c0_133, %c17, %c0_134, %c0_135], %253 {strides = array<i32>} : memref<1x20x8x8xf32, #tpu.memory_space<vmem>>, vector<1x1x8x8xf32>,
    %cst_136 = arith.constant 3.600000e+00 : f32
    %254 = vector.broadcast %cst_136 : f32 to vector<8x8xf32>
    %255 = arith.subf %55, %254 : vector<8x8xf32>
    %256 = arith.mulf %255, %255 : vector<8x8xf32>
    %cst_137 = arith.constant 0.000000e+00 : f32
    %257 = vector.broadcast %cst_137 : f32 to vector<8x8xf32>
    %258 = arith.subf %257, %256 : vector<8x8xf32>
    %cst_138 = arith.constant 1.250000e+01 : f32
    %259 = vector.broadcast %cst_138 : f32 to vector<8x8xf32>
    %260 = arith.mulf %258, %259 : vector<8x8xf32>
    %261 = math.exp %260 : vector<8x8xf32>
    %c0_139 = arith.constant 0 : index
    %c18 = arith.constant 18 : index
    %c0_140 = arith.constant 0 : index
    %c0_141 = arith.constant 0 : index
    %262 = vector.load %arg7[%c0_139, %c18, %c0_140, %c0_141] : memref<1x20x8x8xf32, #tpu.memory_space<vmem>>, vector<1x1x8x8xf32>
    %263 = vector.shape_cast %262 : vector<1x1x8x8xf32> to vector<8x8xf32>
    %264 = vector.shape_cast %261 : vector<8x8xf32> to vector<1x1x8x8xf32>
    tpu.vector_store %arg7[%c0_139, %c18, %c0_140, %c0_141], %264 {strides = array<i32>} : memref<1x20x8x8xf32, #tpu.memory_space<vmem>>, vector<1x1x8x8xf32>,
    %cst_142 = arith.constant 3.800000e+00 : f32
    %265 = vector.broadcast %cst_142 : f32 to vector<8x8xf32>
    %266 = arith.subf %55, %265 : vector<8x8xf32>
    %267 = arith.mulf %266, %266 : vector<8x8xf32>
    %cst_143 = arith.constant 0.000000e+00 : f32
    %268 = vector.broadcast %cst_143 : f32 to vector<8x8xf32>
    %269 = arith.subf %268, %267 : vector<8x8xf32>
    %cst_144 = arith.constant 1.250000e+01 : f32
    %270 = vector.broadcast %cst_144 : f32 to vector<8x8xf32>
    %271 = arith.mulf %269, %270 : vector<8x8xf32>
    %272 = math.exp %271 : vector<8x8xf32>
    %c0_145 = arith.constant 0 : index
    %c19 = arith.constant 19 : index
    %c0_146 = arith.constant 0 : index
    %c0_147 = arith.constant 0 : index
    %273 = vector.load %arg7[%c0_145, %c19, %c0_146, %c0_147] : memref<1x20x8x8xf32, #tpu.memory_space<vmem>>, vector<1x1x8x8xf32>
    %274 = vector.shape_cast %273 : vector<1x1x8x8xf32> to vector<8x8xf32>
    %275 = vector.shape_cast %272 : vector<8x8xf32> to vector<1x1x8x8xf32>
    tpu.vector_store %arg7[%c0_145, %c19, %c0_146, %c0_147], %275 {strides = array<i32>} : memref<1x20x8x8xf32, #tpu.memory_space<vmem>>, vector<1x1x8x8xf32>,
    return
  }
  func.func @transform_0(%arg0: i32, %arg1: i32) -> (i32, i32, i32) {
    %c0_i32 = arith.constant 0 : i32
    %c0_i32_0 = arith.constant 0 : i32
    return %arg0, %arg1, %c0_i32 : i32, i32, i32
  }
  func.func @transform_1(%arg0: i32, %arg1: i32) -> (i32, i32, i32) {
    %c0_i32 = arith.constant 0 : i32
    %c0_i32_0 = arith.constant 0 : i32
    %c0_i32_1 = arith.constant 0 : i32
    return %arg0, %c0_i32, %c0_i32_0 : i32, i32, i32
  }
  func.func @transform_2(%arg0: i32, %arg1: i32) -> (i32, i32, i32) {
    %c0_i32 = arith.constant 0 : i32
    %c0_i32_0 = arith.constant 0 : i32
    return %arg0, %arg1, %c0_i32 : i32, i32, i32
  }
  func.func @transform_3(%arg0: i32, %arg1: i32) -> (i32, i32, i32, i32) {
    %c0_i32 = arith.constant 0 : i32
    %c0_i32_0 = arith.constant 0 : i32
    %c0_i32_1 = arith.constant 0 : i32
    return %arg0, %c0_i32, %arg1, %c0_i32_0 : i32, i32, i32, i32
  }
  func.func @transform_4(%arg0: i32, %arg1: i32) -> (i32, i32, i32) {
    %c0_i32 = arith.constant 0 : i32
    %c0_i32_0 = arith.constant 0 : i32
    return %arg0, %arg1, %c0_i32 : i32, i32, i32
  }
  func.func @transform_5(%arg0: i32, %arg1: i32) -> (i32, i32, i32, i32) {
    %c0_i32 = arith.constant 0 : i32
    %c0_i32_0 = arith.constant 0 : i32
    %c0_i32_1 = arith.constant 0 : i32
    return %arg0, %c0_i32, %arg1, %c0_i32_0 : i32, i32, i32, i32
  }
}

</mosaic_0001>

<llo_original>
// kernel: tpu_custom_call.1
$region0: #{tpu_custom_call.1}
  #allocation0 [shape = 'u32[]', space=smem, size = 0x4, offset = 0x4, fixed_abs, tag = 'smem constant byte address 0x4 - core index']
  #allocation1 [shape = 'u32[144,128]{1,0:T(1,128)}', space=vmem, size = 0x12000, scoped, tag = 'internal scratch']
  %s0 = inlined_call_operand.vmem [shape: f32[2,8,3], index: 0, kind: input, shape index: {}]
  %s1 = inlined_call_operand.vmem [shape: f32[2,3,8], index: 1, kind: input, shape index: {}]
  %s2 = inlined_call_operand.hbm [shape: f32[2,8,8], index: 2, kind: output, shape index: {0}]
  %s3 = inlined_call_operand.hbm [shape: f32[2,3,8,8], index: 3, kind: output, shape index: {1}]
  %s4 = inlined_call_operand.hbm [shape: f32[2,8,8], index: 4, kind: output, shape index: {2}]
  %s5 = inlined_call_operand.vmem [shape: f32[2,20,8,8], index: 5, kind: output, shape index: {3}]
  %6 = xla_tuple %s2, %s3, %s4, %s5
  %s7 = sld [smem:[#allocation0]]
  $region65: #{tpu_custom_call.1} parent=0
    _
  %s9 = ssub.s32 1, %s7
  %s10 = scalar_select 0, %s9, %s7
  $region1: #{tpu_custom_call.1} parent=0
    #allocation2 [shape = 'u8[8192]{0}', space=vmem, size = 0x2000, scoped, tag = 'output window, operand 0']
    #allocation3 [shape = 's32[2]{0}', space=sflag, size = 0x8, scoped, tag = 'scoped memory for tpu_custom_call.1']
    #allocation4 [shape = 'u8[24576]{0}', space=vmem, size = 0x6000, scoped, tag = 'output window, operand 1']
    #allocation5 [shape = 's32[2]{0}', space=sflag, size = 0x8, scoped, tag = 'scoped memory for tpu_custom_call.1']
    #allocation6 [shape = 'u8[8192]{0}', space=vmem, size = 0x2000, scoped, tag = 'output window, operand 2']
    %11 = vsyncpa [#allocation3], 0
    %s12 = scalar_lea.sflag [#allocation3], 1
    %13 = vsyncpa %s12, 0
    %14 = vsyncpa [#allocation5], 0
    %s15 = scalar_lea.sflag [#allocation5], 1
    %16 = vsyncpa %s15, 0
    loop: start=0, step=1, limit=4
    $region2: #{tpu_custom_call.1} parent=1 // loop_pre_header
      _
    $region3: #{tpu_custom_call.1} parent=1 // loop_header
      %s18 = sphi 0, %s22
      %p19 = scmp.ge.s32.totalorder %s18, 4
      %s25 = sphi 0, %s37
      %s26 = sphi 0, %s33
      %s27 = sphi 0, %s25
      %s28 = sphi 0, %s26
      %s29 = sphi 0, %s27
      %s30 = sphi 0, %s28
      %s42 = sphi 0, %s44
      %s45 = sphi 0, %s42
      %s46 = sphi 0, %s45
      %s62 = sphi 0, %s46
      %s68 = sphi 0, %s70
      %s71 = sphi 0, %s68
      %s72 = sphi 0, %s71
      %s88 = sphi 0, %s72
      %s96 = sphi 0, %s98
      %s99 = sphi 0, %s96
      %s100 = sphi 0, %s99
      %s116 = sphi 0, %s100
      %s124 = sphi 0, %s126
      %s127 = sphi 0, %s124
      %s128 = sphi 0, %s127
      %s144 = sphi 0, %s128
      %s152 = sphi 0, %s154
      %s155 = sphi 0, %s152
      %s156 = sphi 0, %s155
      %s172 = sphi 0, %s156
      %s180 = sphi 0, %s182
      %s183 = sphi 0, %s180
      %s184 = sphi 0, %s183
      %s200 = sphi 0, %s184
    $region4: #{tpu_custom_call.1} parent=1 // loop_header_branch
      %21 = sbr.rel (%p19) target = $region8
    $region5: #{tpu_custom_call.1} parent=1 // loop_body
      %s23 = ssub.s32 %s18, 1
      %s24 = ssub.s32 %s18, 2
      %s31 = sadd.s32 1, %s26
      %p32 = scmp.ge.s32.totalorder %s31, 1
      %s33 = scalar_select %p32, 0, %s31
      %s34 = sadd.s32 1, %s25
      %s35 = scalar_select %p32, %s34, %s25
      %p36 = scmp.ge.s32.totalorder %s35, 2
      %s37 = scalar_select %p36, 0, %s35
      %s38 = ssub.s32 %s25, %s37
      %s39 = ssub.s32 %s26, %s33
      %s40 = sor.u32 %s38, %s39
      %p41 = scmp.eq.s32.totalorder %s40, 0
      %s43 = sadd.s32 %s42, 1
      %s44 = scalar_select %p41, %s42, %s43
      %p47 = pneg %p41
      %p48 = scmp.eq.s32.totalorder %s18, 1
      %p49 = por %p47, %p48
      %p50 = scmp.ne.s32.totalorder %s42, %s45
      %p51 = scmp.eq.s32.totalorder %s18, 0
      %p52 = por %p50, %p51
      %p53 = scmp.ne.s32.totalorder %s42, %s45
      %p54 = scmp.eq.s32.totalorder %s23, 1
      %p55 = por %p53, %p54
      %p56 = scmp.ne.s32.totalorder %s45, %s46
      %p57 = scmp.eq.s32.totalorder %s23, 0
      %p58 = por %p56, %p57
      %p59 = scmp.ne.s32.totalorder %s45, %s46
      %p60 = scmp.eq.s32.totalorder %s24, 1
      %p61 = por %p59, %p60
      %p63 = scmp.ne.s32.totalorder %s46, %s62
      %p64 = scmp.eq.s32.totalorder %s24, 0
      %p65 = por %p63, %p64
      %s66 = ssub.s32 %s25, %s37
      %p67 = scmp.eq.s32.totalorder %s66, 0
      %s69 = sadd.s32 %s68, 1
      %s70 = scalar_select %p67, %s68, %s69
      %p73 = pneg %p67
      %p74 = scmp.eq.s32.totalorder %s18, 1
      %p75 = por %p73, %p74
      %p76 = scmp.ne.s32.totalorder %s68, %s71
      %p77 = scmp.eq.s32.totalorder %s18, 0
      %p78 = por %p76, %p77
      %p79 = scmp.ne.s32.totalorder %s68, %s71
      %p80 = scmp.eq.s32.totalorder %s23, 1
      %p81 = por %p79, %p80
      %p82 = scmp.ne.s32.totalorder %s71, %s72
      %p83 = scmp.eq.s32.totalorder %s23, 0
      %p84 = por %p82, %p83
      %p85 = scmp.ne.s32.totalorder %s71, %s72
      %p86 = scmp.eq.s32.totalorder %s24, 1
      %p87 = por %p85, %p86
      %p89 = scmp.ne.s32.totalorder %s72, %s88
      %p90 = scmp.eq.s32.totalorder %s24, 0
      %p91 = por %p89, %p90
      %s92 = ssub.s32 %s25, %s37
      %s93 = ssub.s32 %s26, %s33
      %s94 = sor.u32 %s92, %s93
      %p95 = scmp.eq.s32.totalorder %s94, 0
      %s97 = sadd.s32 %s96, 1
      %s98 = scalar_select %p95, %s96, %s97
      %p101 = pneg %p95
      %p102 = scmp.eq.s32.totalorder %s18, 1
      %p103 = por %p101, %p102
      %p104 = scmp.ne.s32.totalorder %s96, %s99
      %p105 = scmp.eq.s32.totalorder %s18, 0
      %p106 = por %p104, %p105
      %p107 = scmp.ne.s32.totalorder %s96, %s99
      %p108 = scmp.eq.s32.totalorder %s23, 1
      %p109 = por %p107, %p108
      %p110 = scmp.ne.s32.totalorder %s99, %s100
      %p111 = scmp.eq.s32.totalorder %s23, 0
      %p112 = por %p110, %p111
      %p113 = scmp.ne.s32.totalorder %s99, %s100
      %p114 = scmp.eq.s32.totalorder %s24, 1
      %p115 = por %p113, %p114
      %p117 = scmp.ne.s32.totalorder %s100, %s116
      %p118 = scmp.eq.s32.totalorder %s24, 0
      %p119 = por %p117, %p118
      %s120 = ssub.s32 %s25, %s37
      %s121 = ssub.s32 %s26, %s33
      %s122 = sor.u32 %s120, %s121
      %p123 = scmp.eq.s32.totalorder %s122, 0
      %s125 = sadd.s32 %s124, 1
      %s126 = scalar_select %p123, %s124, %s125
      %p129 = pneg %p123
      %p130 = scmp.eq.s32.totalorder %s18, 1
      %p131 = por %p129, %p130
      %p132 = scmp.ne.s32.totalorder %s124, %s127
      %p133 = scmp.eq.s32.totalorder %s18, 0
      %p134 = por %p132, %p133
      %p135 = scmp.ne.s32.totalorder %s124, %s127
      %p136 = scmp.eq.s32.totalorder %s23, 1
      %p137 = por %p135, %p136
      %p138 = scmp.ne.s32.totalorder %s127, %s128
      %p139 = scmp.eq.s32.totalorder %s23, 0
      %p140 = por %p138, %p139
      %p141 = scmp.ne.s32.totalorder %s127, %s128
      %p142 = scmp.eq.s32.totalorder %s24, 1
      %p143 = por %p141, %p142
      %p145 = scmp.ne.s32.totalorder %s128, %s144
      %p146 = scmp.eq.s32.totalorder %s24, 0
      %p147 = por %p145, %p146
      %s148 = ssub.s32 %s25, %s37
      %s149 = ssub.s32 %s26, %s33
      %s150 = sor.u32 %s148, %s149
      %p151 = scmp.eq.s32.totalorder %s150, 0
      %s153 = sadd.s32 %s152, 1
      %s154 = scalar_select %p151, %s152, %s153
      %p157 = pneg %p151
      %p158 = scmp.eq.s32.totalorder %s18, 1
      %p159 = por %p157, %p158
      %p160 = scmp.ne.s32.totalorder %s152, %s155
      %p161 = scmp.eq.s32.totalorder %s18, 0
      %p162 = por %p160, %p161
      %p163 = scmp.ne.s32.totalorder %s152, %s155
      %p164 = scmp.eq.s32.totalorder %s23, 1
      %p165 = por %p163, %p164
      %p166 = scmp.ne.s32.totalorder %s155, %s156
      %p167 = scmp.eq.s32.totalorder %s23, 0
      %p168 = por %p166, %p167
      %p169 = scmp.ne.s32.totalorder %s155, %s156
      %p170 = scmp.eq.s32.totalorder %s24, 1
      %p171 = por %p169, %p170
      %p173 = scmp.ne.s32.totalorder %s156, %s172
      %p174 = scmp.eq.s32.totalorder %s24, 0
      %p175 = por %p173, %p174
      %s176 = ssub.s32 %s25, %s37
      %s177 = ssub.s32 %s26, %s33
      %s178 = sor.u32 %s176, %s177
      %p179 = scmp.eq.s32.totalorder %s178, 0
      %s181 = sadd.s32 %s180, 1
      %s182 = scalar_select %p179, %s180, %s181
      %p185 = pneg %p179
      %p186 = scmp.eq.s32.totalorder %s18, 1
      %p187 = por %p185, %p186
      %p188 = scmp.ne.s32.totalorder %s180, %s183
      %p189 = scmp.eq.s32.totalorder %s18, 0
      %p190 = por %p188, %p189
      %p191 = scmp.ne.s32.totalorder %s180, %s183
      %p192 = scmp.eq.s32.totalorder %s23, 1
      %p193 = por %p191, %p192
      %p194 = scmp.ne.s32.totalorder %s183, %s184
      %p195 = scmp.eq.s32.totalorder %s23, 0
      %p196 = por %p194, %p195
      %p197 = scmp.ne.s32.totalorder %s183, %s184
      %p198 = scmp.eq.s32.totalorder %s24, 1
      %p199 = por %p197, %p198
      %p201 = scmp.ne.s32.totalorder %s184, %s200
      %p202 = scmp.eq.s32.totalorder %s24, 0
      %p203 = por %p201, %p202
      %p204 = scmp.le.s32.totalorder 1, %s18
      %p205 = scmp.lt.s32.totalorder %s18, 3
      %p206 = pnand %p204, %p205
      %p207 = pneg %p206
      // Predicated region
      $region9: #{tpu_custom_call.1} parent=5 // pred_check
        _
      $region10: #{tpu_custom_call.1} parent=5 // pred_check_branch
        %209 = sbr.rel (%p206) target = $region12
      $region11: #{tpu_custom_call.1} parent=5 // pred_region
        %s210 = ssub.s32 %s18, 1
      $region12: #{tpu_custom_call.1} parent=5 // pred_fallthru
        _
      %p211 = scmp.lt.s32.totalorder %s18, 2
      // Predicated region
      $region13: #{tpu_custom_call.1} parent=5 // pred_check
        %p212 = pneg %p211
      $region14: #{tpu_custom_call.1} parent=5 // pred_check_branch
        %214 = sbr.rel (%p212) target = $region16
      $region15: #{tpu_custom_call.1} parent=5 // pred_region
        // Predicated region
        $region17: #{tpu_custom_call.1} parent=15 // pred_check
          %p215 = pneg %p52
        $region18: #{tpu_custom_call.1} parent=15 // pred_check_branch
          %217 = sbr.rel (%p215) target = $region20
        $region19: #{tpu_custom_call.1} parent=15 // pred_region
          %p218 = scmp.lt.s32.totalorder %s25, 1
          %s219 = scalar_select %p218, %s25, 1
          %p220 = scmp.lt.s32.totalorder %s26, 0
          %s221 = scalar_select %p220, %s26, 0
          %s222 = sadd.s32 %s221, %s219
          %s223 = smul.addr %s222, 8
          %s224 = scalar_lea.vmem %s0, %s223
        $region20: #{tpu_custom_call.1} parent=15 // pred_fallthru
          _
        // Predicated region
        $region21: #{tpu_custom_call.1} parent=15 // pred_check
          %p225 = pneg %p78
        $region22: #{tpu_custom_call.1} parent=15 // pred_check_branch
          %227 = sbr.rel (%p225) target = $region24
        $region23: #{tpu_custom_call.1} parent=15 // pred_region
          %p228 = scmp.lt.s32.totalorder %s25, 1
          %s229 = scalar_select %p228, %s25, 1
          %s230 = smul.addr %s229, 4
          %s231 = scalar_lea.vmem %s1, %s230
        $region24: #{tpu_custom_call.1} parent=15 // pred_fallthru
          _
      $region16: #{tpu_custom_call.1} parent=5 // pred_fallthru
        _
      %p232 = scmp.le.s32.totalorder 1, %s18
      %p233 = scmp.lt.s32.totalorder %s18, 3
      %p234 = pnand %p232, %p233
      %p235 = pneg %p234
      // Predicated region
      $region25: #{tpu_custom_call.1} parent=5 // pred_check
        _
      $region26: #{tpu_custom_call.1} parent=5 // pred_check_branch
        %237 = sbr.rel (%p234) target = $region28
      $region27: #{tpu_custom_call.1} parent=5 // pred_region
        %s238 = ssub.s32 %s18, 1
        %p239 = scmp.lt.s32.totalorder %s27, 1
        %s240 = scalar_select %p239, %s27, 1
        %p241 = scmp.lt.s32.totalorder %s28, 0
        %s242 = scalar_select %p241, %s28, 0
        %s243 = sadd.s32 %s242, %s240
        %s244 = smul.addr %s243, 8
        %s245 = scalar_lea.vmem %s0, %s244
        %p246 = pneg %p58
        %p247 = pneg %p55
        %p248 = scmp.lt.s32.totalorder %s27, 1
        %s249 = scalar_select %p248, %s27, 1
        %s250 = smul.addr %s249, 4
        %s251 = scalar_lea.vmem %s1, %s250
        %p252 = pneg %p84
        %p253 = pneg %p81
        %p254 = pneg %p112
        %p255 = pneg %p109
        %s256 = sand.u32 %s99, 1
        %s257 = scalar_lea.sflag [#allocation3], %s256
        %s258 = sand.u32 %s99, 1
        %s259 = smul.addr %s258, 8
        %s260 = scalar_lea.vmem [#allocation2], %s259
        %p261 = pneg %p140
        %p262 = pneg %p137
        %s263 = sand.u32 %s23, 1
        %s264 = scalar_lea.sflag [#allocation5], %s263
        %s265 = sand.u32 %s127, 1
        %s266 = smul.addr %s265, 24
        %s267 = scalar_lea.vmem [#allocation4], %s266
        %p268 = pneg %p168
        %p269 = pneg %p165
        %s270 = sand.u32 %s23, 1
        %s271 = scalar_lea.sflag [#allocation5], %s270
        %s272 = sand.u32 %s155, 1
        %s273 = smul.addr %s272, 8
        %s274 = scalar_lea.vmem [#allocation6], %s273
        %p275 = pneg %p196
        %p276 = pneg %p193
        %p277 = scmp.lt.s32.totalorder %s27, 1
        %s278 = scalar_select %p277, %s27, 1
        %p279 = scmp.lt.s32.totalorder %s28, 0
        %s280 = scalar_select %p279, %s28, 0
        %s281 = smul.addr %s278, 20
        %s282 = sadd.s32 %s280, %s281
        %s283 = smul.addr %s282, 8
        %s284 = scalar_lea.vmem %s5, %s283
        %p285 = scmp.lt.s32.totalorder %s27, 1
        %s286 = scalar_select %p285, %s27, 1
        %p287 = scmp.lt.s32.totalorder %s28, 0
        %s288 = scalar_select %p287, %s28, 0
        %s289 = sadd.s32 %s288, %s286
        %s290 = smul.addr %s289, 8
        %s291 = scalar_lea.vmem %s0, %s290
        %p292 = scmp.lt.s32.totalorder %s27, 1
        %s293 = scalar_select %p292, %s27, 1
        %s294 = smul.addr %s293, 4
        %s295 = scalar_lea.vmem %s1, %s294
        %p296 = scmp.lt.s32.totalorder %s27, 1
        %s297 = scalar_select %p296, %s27, 1
        %p298 = scmp.lt.s32.totalorder %s28, 0
        %s299 = scalar_select %p298, %s28, 0
        %s300 = smul.addr %s297, 20
        %s301 = sadd.s32 %s299, %s300
        %s302 = smul.addr %s301, 8
        %s303 = scalar_lea.vmem %s5, %s302
        %v304 = vld [vmem:[%s291] sm:$0xff]
        %v305 = vld [vmem:[%s295] sm:$0x7]
        %307 = vset.pattern.permute.xlu0 0
        %308 = vperm.xlu0 %307, %v304
        %v309 = vpop.permute.xlu0 %308
        %v311 = vlaneseq
        %v312 = vshrl.u32 %v311, 7
        %v313 = vsub.s32 0, %v312
        %v314 = vrot.slane %v305, %v313
        %v315 = vsub.f32 %v309, %v314
        %316 = vset.pattern.permute.xlu0 1
        %317 = vperm.xlu0 %316, %v304
        %v318 = vpop.permute.xlu0 %317
        %v320 = vlaneseq
        %v321 = vshrl.u32 %v320, 7
        %v322 = vsub.s32 1, %v321
        %v323 = vrot.slane %v305, %v322
        %v324 = vsub.f32 %v318, %v323
        %325 = vset.pattern.permute.xlu0 2
        %326 = vperm.xlu0 %325, %v304
        %v327 = vpop.permute.xlu0 %326
        %v329 = vlaneseq
        %v330 = vshrl.u32 %v329, 7
        %v331 = vsub.s32 2, %v330
        %v332 = vrot.slane %v305, %v331
        %v333 = vsub.f32 %v327, %v332
        %v334 = vmul.f32 %v315, %v315
        %v335 = vmul.f32 %v324, %v324
        %v336 = vadd.f32 %v334, %v335
        %v337 = vmul.f32 %v333, %v333
        %v338 = vadd.f32 %v336, %v337
        %vm339 = vcmp.gt.f32.partialorder %v338, 0.0
        %v340 = vrsqrt.pop %v338
        %v341 = vmul.f32 %v338, %v340
        %vm342 = vcmp.eq.f32.partialorder %v338, inf
        %v343 = vsel %vm342, %v338, %v341
        %vm344 = vcmp.eq.f32.partialorder %v338, 0.0
        %v345 = vand.u32 %v338, 2147483648
        %v346 = vsel %vm344, %v345, %v343
        %vm347 = vcmask 64512
        %348 = vst.msk [vmem:[%s260] sm:$0xff] %vm347, %v346
        %v349 = vrsqrt.pop %v338
        %v350 = vsel %vm339, %v349, 0.0
        %v351 = vmul.f32 %v315, %v350
        %352 = vst.msk [vmem:[%s267] sm:$0xff] %vm347, %v351
        %v353 = vmul.f32 %v324, %v350
        %s354 = scalar_lea.vmem %s267, 8 [#allocation4]
        %355 = vst.msk [vmem:[%s354] sm:$0xff] %vm347, %v353
        %v356 = vmul.f32 %v333, %v350
        %s357 = scalar_lea.vmem %s267, 16 [#allocation4]
        %358 = vst.msk [vmem:[%s357] sm:$0xff] %vm347, %v356
        %vm359 = vcmp.lt.f32.partialorder %v346, 4.0
        %v360 = vsel %vm359, 1, 0
        %v361 = vcvt.s32.f32 %v360
        %362 = vst.msk [vmem:[%s274] sm:$0xff] %vm347, %v361
        %v363 = vmul.f32 %v346, 0.5291772
        %v364 = vadd.f32 %v363, 1e-11
        %v365 = vmul.f32 %v364, %v364
        %v366 = vsub.f32 0.0, %v365
        %v367 = vmul.f32 %v366, 12.5
        %v368 = vmul.f32 %v367, 1.442695
        %v369 = vpow.pop %v368
        %370 = vst.msk [vmem:[%s303] sm:$0xff] %vm347, %v369
        %v371 = vsub.f32 %v364, 0.2
        %v372 = vmul.f32 %v371, %v371
        %v373 = vsub.f32 0.0, %v372
        %v374 = vmul.f32 %v373, 12.5
        %v375 = vmul.f32 %v374, 1.442695
        %v376 = vpow.pop %v375
        %s377 = scalar_lea.vmem %s303, 8
        %378 = vst.msk [vmem:[%s377] sm:$0xff] %vm347, %v376
        %v379 = vsub.f32 %v364, 0.4
        %v380 = vmul.f32 %v379, %v379
        %v381 = vsub.f32 0.0, %v380
        %v382 = vmul.f32 %v381, 12.5
        %v383 = vmul.f32 %v382, 1.442695
        %v384 = vpow.pop %v383
        %s385 = scalar_lea.vmem %s303, 16
        %386 = vst.msk [vmem:[%s385] sm:$0xff] %vm347, %v384
        %v387 = vsub.f32 %v364, 0.6
        %v388 = vmul.f32 %v387, %v387
        %v389 = vsub.f32 0.0, %v388
        %v390 = vmul.f32 %v389, 12.5
        %v391 = vmul.f32 %v390, 1.442695
        %v392 = vpow.pop %v391
        %s393 = scalar_lea.vmem %s303, 24
        %394 = vst.msk [vmem:[%s393] sm:$0xff] %vm347, %v392
        %v395 = vsub.f32 %v364, 0.8
        %v396 = vmul.f32 %v395, %v395
        %v397 = vsub.f32 0.0, %v396
        %v398 = vmul.f32 %v397, 12.5
        %v399 = vmul.f32 %v398, 1.442695
        %v400 = vpow.pop %v399
        %s401 = scalar_lea.vmem %s303, 32
        %402 = vst.msk [vmem:[%s401] sm:$0xff] %vm347, %v400
        %v403 = vsub.f32 %v364, 1.0
        %v404 = vmul.f32 %v403, %v403
        %v405 = vsub.f32 0.0, %v404
        %v406 = vmul.f32 %v405, 12.5
        %v407 = vmul.f32 %v406, 1.442695
        %v408 = vpow.pop %v407
        %s409 = scalar_lea.vmem %s303, 40
        %410 = vst.msk [vmem:[%s409] sm:$0xff] %vm347, %v408
        %v411 = vsub.f32 %v364, 1.2
        %v412 = vmul.f32 %v411, %v411
        %v413 = vsub.f32 0.0, %v412
        %v414 = vmul.f32 %v413, 12.5
        %v415 = vmul.f32 %v414, 1.442695
        %v416 = vpow.pop %v415
        %s417 = scalar_lea.vmem %s303, 48
        %418 = vst.msk [vmem:[%s417] sm:$0xff] %vm347, %v416
        %v419 = vsub.f32 %v364, 1.4
        %v420 = vmul.f32 %v419, %v419
        %v421 = vsub.f32 0.0, %v420
        %v422 = vmul.f32 %v421, 12.5
        %v423 = vmul.f32 %v422, 1.442695
        %v424 = vpow.pop %v423
        %s425 = scalar_lea.vmem %s303, 56
        %426 = vst.msk [vmem:[%s425] sm:$0xff] %vm347, %v424
        %v427 = vsub.f32 %v364, 1.6
        %v428 = vmul.f32 %v427, %v427
        %v429 = vsub.f32 0.0, %v428
        %v430 = vmul.f32 %v429, 12.5
        %v431 = vmul.f32 %v430, 1.442695
        %v432 = vpow.pop %v431
        %s433 = scalar_lea.vmem %s303, 64
        %434 = vst.msk [vmem:[%s433] sm:$0xff] %vm347, %v432
        %v435 = vsub.f32 %v364, 1.8
        %v436 = vmul.f32 %v435, %v435
        %v437 = vsub.f32 0.0, %v436
        %v438 = vmul.f32 %v437, 12.5
        %v439 = vmul.f32 %v438, 1.442695
        %v440 = vpow.pop %v439
        %s441 = scalar_lea.vmem %s303, 72
        %442 = vst.msk [vmem:[%s441] sm:$0xff] %vm347, %v440
        %v443 = vsub.f32 %v364, 2.0
        %v444 = vmul.f32 %v443, %v443
        %v445 = vsub.f32 0.0, %v444
        %v446 = vmul.f32 %v445, 12.5
        %v447 = vmul.f32 %v446, 1.442695
        %v448 = vpow.pop %v447
        %s449 = scalar_lea.vmem %s303, 80
        %450 = vst.msk [vmem:[%s449] sm:$0xff] %vm347, %v448
        %v451 = vsub.f32 %v364, 2.2
        %v452 = vmul.f32 %v451, %v451
        %v453 = vsub.f32 0.0, %v452
        %v454 = vmul.f32 %v453, 12.5
        %v455 = vmul.f32 %v454, 1.442695
        %v456 = vpow.pop %v455
        %s457 = scalar_lea.vmem %s303, 88
        %458 = vst.msk [vmem:[%s457] sm:$0xff] %vm347, %v456
        %v459 = vsub.f32 %v364, 2.4
        %v460 = vmul.f32 %v459, %v459
        %v461 = vsub.f32 0.0, %v460
        %v462 = vmul.f32 %v461, 12.5
        %v463 = vmul.f32 %v462, 1.442695
        %v464 = vpow.pop %v463
        %s465 = scalar_lea.vmem %s303, 96
        %466 = vst.msk [vmem:[%s465] sm:$0xff] %vm347, %v464
        %v467 = vsub.f32 %v364, 2.6
        %v468 = vmul.f32 %v467, %v467
        %v469 = vsub.f32 0.0, %v468
        %v470 = vmul.f32 %v469, 12.5
        %v471 = vmul.f32 %v470, 1.442695
        %v472 = vpow.pop %v471
        %s473 = scalar_lea.vmem %s303, 104
        %474 = vst.msk [vmem:[%s473] sm:$0xff] %vm347, %v472
        %v475 = vsub.f32 %v364, 2.8
        %v476 = vmul.f32 %v475, %v475
        %v477 = vsub.f32 0.0, %v476
        %v478 = vmul.f32 %v477, 12.5
        %v479 = vmul.f32 %v478, 1.442695
        %v480 = vpow.pop %v479
        %s481 = scalar_lea.vmem %s303, 112
        %482 = vst.msk [vmem:[%s481] sm:$0xff] %vm347, %v480
        %v483 = vsub.f32 %v364, 3.0
        %v484 = vmul.f32 %v483, %v483
        %v485 = vsub.f32 0.0, %v484
        %v486 = vmul.f32 %v485, 12.5
        %v487 = vmul.f32 %v486, 1.442695
        %v488 = vpow.pop %v487
        %s489 = scalar_lea.vmem %s303, 120
        %490 = vst.msk [vmem:[%s489] sm:$0xff] %vm347, %v488
        %v491 = vsub.f32 %v364, 3.2
        %v492 = vmul.f32 %v491, %v491
        %v493 = vsub.f32 0.0, %v492
        %v494 = vmul.f32 %v493, 12.5
        %v495 = vmul.f32 %v494, 1.442695
        %v496 = vpow.pop %v495
        %s497 = scalar_lea.vmem %s303, 128
        %498 = vst.msk [vmem:[%s497] sm:$0xff] %vm347, %v496
        %v499 = vsub.f32 %v364, 3.4
        %v500 = vmul.f32 %v499, %v499
        %v501 = vsub.f32 0.0, %v500
        %v502 = vmul.f32 %v501, 12.5
        %v503 = vmul.f32 %v502, 1.442695
        %v504 = vpow.pop %v503
        %s505 = scalar_lea.vmem %s303, 136
        %506 = vst.msk [vmem:[%s505] sm:$0xff] %vm347, %v504
        %v507 = vsub.f32 %v364, 3.6
        %v508 = vmul.f32 %v507, %v507
        %v509 = vsub.f32 0.0, %v508
        %v510 = vmul.f32 %v509, 12.5
        %v511 = vmul.f32 %v510, 1.442695
        %v512 = vpow.pop %v511
        %s513 = scalar_lea.vmem %s303, 144
        %514 = vst.msk [vmem:[%s513] sm:$0xff] %vm347, %v512
        %v515 = vsub.f32 %v364, 3.8
        %v516 = vmul.f32 %v515, %v515
        %v517 = vsub.f32 0.0, %v516
        %v518 = vmul.f32 %v517, 12.5
        %v519 = vmul.f32 %v518, 1.442695
        %v520 = vpow.pop %v519
        %s521 = scalar_lea.vmem %s303, 152
        %522 = vst.msk [vmem:[%s521] sm:$0xff] %vm347, %v520
        %s523 = sand.u32 %s99, 1
        %s524 = scalar_lea.sflag [#allocation3], %s523
        %s525 = sand.u32 %s99, 1
        %s526 = smul.addr %s525, 8
        %s527 = scalar_lea.vmem [#allocation2], %s526
        %s528 = sand.u32 %s23, 1
        %s529 = scalar_lea.sflag [#allocation5], %s528
        %s530 = sand.u32 %s127, 1
        %s531 = smul.addr %s530, 24
        %s532 = scalar_lea.vmem [#allocation4], %s531
        %s533 = sand.u32 %s23, 1
        %s534 = scalar_lea.sflag [#allocation5], %s533
        %s535 = sand.u32 %s155, 1
        %s536 = smul.addr %s535, 8
        %s537 = scalar_lea.vmem [#allocation6], %s536
        %p538 = scmp.lt.s32.totalorder %s27, 1
        %s539 = scalar_select %p538, %s27, 1
        %p540 = scmp.lt.s32.totalorder %s28, 0
        %s541 = scalar_select %p540, %s28, 0
        %s542 = smul.addr %s539, 20
        %s543 = sadd.s32 %s541, %s542
        %s544 = smul.addr %s543, 8
        %s545 = scalar_lea.vmem %s5, %s544
        // Predicated region
        $region29: #{tpu_custom_call.1} parent=27 // pred_check
          %p546 = pneg %p109
        $region30: #{tpu_custom_call.1} parent=27 // pred_check_branch
          %548 = sbr.rel (%p546) target = $region32
        $region31: #{tpu_custom_call.1} parent=27 // pred_region
          %s550 = ssub.s32 128, 128
          %551 = vsyncadd %s524, %s550
          %s552 = sadd.s32 %s28, %s27
          %s553 = smul.addr %s552, 128
          %s554 = scalar_lea.hbm %s2, %s553
          %s556 = sshll.u32 %s527, 4
          %s557 = int_to_ptr.vmem [resolvable:$true] %s556
          %559 = dma.vmem_to_hbm [thread:$0]  %s557, 128, %s554, %s524
        $region32: #{tpu_custom_call.1} parent=27 // pred_fallthru
          _
        // Predicated region
        $region33: #{tpu_custom_call.1} parent=27 // pred_check
          %p560 = pneg %p137
        $region34: #{tpu_custom_call.1} parent=27 // pred_check_branch
          %562 = sbr.rel (%p560) target = $region36
        $region35: #{tpu_custom_call.1} parent=27 // pred_region
          %s564 = ssub.s32 384, 384
          %565 = vsyncadd %s529, %s564
          %s566 = smul.addr %s27, 3
          %s567 = sadd.s32 %s28, %s566
          %s568 = smul.addr %s567, 128
          %s569 = scalar_lea.hbm %s3, %s568
          %s570 = sshll.u32 %s532, 4
          %s571 = int_to_ptr.vmem [resolvable:$true] %s570
          %576 = dma.vmem_to_hbm [thread:$0]  %s571, 384, %s569, %s529, 128, 128, 8
        $region36: #{tpu_custom_call.1} parent=27 // pred_fallthru
          _
        // Predicated region
        $region37: #{tpu_custom_call.1} parent=27 // pred_check
          %p577 = pneg %p165
        $region38: #{tpu_custom_call.1} parent=27 // pred_check_branch
          %579 = sbr.rel (%p577) target = $region40
        $region39: #{tpu_custom_call.1} parent=27 // pred_region
          %s581 = ssub.s32 128, 128
          %582 = vsyncadd %s534, %s581
          %s583 = sadd.s32 %s28, %s27
          %s584 = smul.addr %s583, 128
          %s585 = scalar_lea.hbm %s4, %s584
          %s587 = sshll.u32 %s537, 4
          %s588 = int_to_ptr.vmem [resolvable:$true] %s587
          %590 = dma.vmem_to_hbm [thread:$0]  %s588, 128, %s585, %s534
        $region40: #{tpu_custom_call.1} parent=27 // pred_fallthru
          _
        // Predicated region
        $region41: #{tpu_custom_call.1} parent=27 // pred_check
          %p591 = pneg %p193
        $region42: #{tpu_custom_call.1} parent=27 // pred_check_branch
          %593 = sbr.rel (%p591) target = $region44
        $region43: #{tpu_custom_call.1} parent=27 // pred_region
          _
        $region44: #{tpu_custom_call.1} parent=27 // pred_fallthru
          _
      $region28: #{tpu_custom_call.1} parent=5 // pred_fallthru
        _
      %p594 = scmp.le.s32.totalorder 2, %s18
      // Predicated region
      $region45: #{tpu_custom_call.1} parent=5 // pred_check
        %p595 = pneg %p594
      $region46: #{tpu_custom_call.1} parent=5 // pred_check_branch
        %597 = sbr.rel (%p595) target = $region48
      $region47: #{tpu_custom_call.1} parent=5 // pred_region
        %s598 = ssub.s32 %s18, 2
        // Predicated region
        $region49: #{tpu_custom_call.1} parent=47 // pred_check
          %p599 = pneg %p115
        $region50: #{tpu_custom_call.1} parent=47 // pred_check_branch
          %601 = sbr.rel (%p599) target = $region52
        $region51: #{tpu_custom_call.1} parent=47 // pred_region
          %s602 = sand.u32 %s100, 1
          %s603 = scalar_lea.sflag [#allocation3], %s602
          %s604 = sand.u32 %s100, 1
          %s605 = smul.addr %s604, 8
          %s606 = scalar_lea.vmem [#allocation2], %s605
          %607 = dma.done %s603, 128
        $region52: #{tpu_custom_call.1} parent=47 // pred_fallthru
          _
        // Predicated region
        $region53: #{tpu_custom_call.1} parent=47 // pred_check
          %p608 = pneg %p143
        $region54: #{tpu_custom_call.1} parent=47 // pred_check_branch
          %610 = sbr.rel (%p608) target = $region56
        $region55: #{tpu_custom_call.1} parent=47 // pred_region
          %s611 = sand.u32 %s24, 1
          %s612 = scalar_lea.sflag [#allocation5], %s611
          %s613 = sand.u32 %s128, 1
          %s614 = smul.addr %s613, 24
          %s615 = scalar_lea.vmem [#allocation4], %s614
          %616 = dma.done %s612, 384
        $region56: #{tpu_custom_call.1} parent=47 // pred_fallthru
          _
        // Predicated region
        $region57: #{tpu_custom_call.1} parent=47 // pred_check
          %p617 = pneg %p171
        $region58: #{tpu_custom_call.1} parent=47 // pred_check_branch
          %619 = sbr.rel (%p617) target = $region60
        $region59: #{tpu_custom_call.1} parent=47 // pred_region
          %s620 = sand.u32 %s24, 1
          %s621 = scalar_lea.sflag [#allocation5], %s620
          %s622 = sand.u32 %s156, 1
          %s623 = smul.addr %s622, 8
          %s624 = scalar_lea.vmem [#allocation6], %s623
          %625 = dma.done %s621, 128
        $region60: #{tpu_custom_call.1} parent=47 // pred_fallthru
          _
        // Predicated region
        $region61: #{tpu_custom_call.1} parent=47 // pred_check
          %p626 = pneg %p199
        $region62: #{tpu_custom_call.1} parent=47 // pred_check_branch
          %628 = sbr.rel (%p626) target = $region64
        $region63: #{tpu_custom_call.1} parent=47 // pred_region
          %p629 = scmp.lt.s32.totalorder %s29, 1
          %s630 = scalar_select %p629, %s29, 1
          %p631 = scmp.lt.s32.totalorder %s30, 0
          %s632 = scalar_select %p631, %s30, 0
          %s633 = smul.addr %s630, 20
          %s634 = sadd.s32 %s632, %s633
          %s635 = smul.addr %s634, 8
          %s636 = scalar_lea.vmem %s5, %s635
        $region64: #{tpu_custom_call.1} parent=47 // pred_fallthru
          _
      $region48: #{tpu_custom_call.1} parent=5 // pred_fallthru
        _
    $region6: #{tpu_custom_call.1} parent=1 // loop_footer
      %s22 = sadd.s32 1, %s18
    $region7: #{tpu_custom_call.1} parent=1 // loop_footer_branch
      %17 = sbr.rel target = $region3
    $region8: #{tpu_custom_call.1} parent=1 // loop_exit
      _
    %637 = vsyncpa [#allocation3], 1
    %s638 = scalar_lea.sflag [#allocation3], 1
    %639 = vsyncpa %s638, 1
    %640 = vsyncpa [#allocation5], 1
    %s641 = scalar_lea.sflag [#allocation5], 1
    %642 = vsyncpa %s641, 1

</llo_original>
